<compile_context>
chip_gen: v7x
topology: tpu7x:2x2x1
jax: 0.10.0
libtpu: 0.0.40
codegen_flags: <defaults>
</compile_context>

<pallas_src>
import jax
import jax.numpy as jnp
from jax.experimental import pallas as pl
from jax.experimental.pallas import tpu as pltpu

HIDDEN_SIZE = 256
IMAGE_SIZE = 28 * 28          # 784
LATENT_SIZE = 100

LATENT_PAD = 128              # 100 -> 128  (clean MXU K pass)
IMAGE_PAD = 896               # 784 -> 896 = 7*128 (lane-dense N / stores)


def _round_up(x, m):
    return (x + m - 1) // m * m


def _generator_kernel(x_ref, w1_ref, b1_ref, w2_ref, b2_ref, w3_ref, b3_ref, o_ref):
    # Three MXU matmuls (bf16 inputs, f32 accumulation); ReLU on the VPU,
    # Tanh on the EUP.  One batch tile per grid step; weights are resident.
    x = x_ref[...]                                                   # (TILE_B, 128) bf16

    h1 = jnp.dot(x, w1_ref[...], preferred_element_type=jnp.float32) + b1_ref[...]
    h1 = jnp.maximum(h1, 0.0).astype(jnp.bfloat16)

    h2 = jnp.dot(h1, w2_ref[...], preferred_element_type=jnp.float32) + b2_ref[...]
    h2 = jnp.maximum(h2, 0.0).astype(jnp.bfloat16)

    out = jnp.dot(h2, w3_ref[...], preferred_element_type=jnp.float32) + b3_ref[...]
    o_ref[...] = jnp.tanh(out).astype(o_ref.dtype)                   # (TILE_B, 896) f32


def prepare_params(params):
    """Pad + cast the f32 [in, out] params into the kernel's layout:
       w1: (128, 256) bf16, w2: (256, 256) bf16, w3: (256, 896) bf16,
       b1/b2: (1, 256) f32, b3: (1, 896) f32.  Zero padding keeps the math exact."""
    w1 = jnp.zeros((LATENT_PAD, HIDDEN_SIZE), jnp.bfloat16).at[:LATENT_SIZE, :].set(
        params["w1"].astype(jnp.bfloat16))
    w2 = params["w2"].astype(jnp.bfloat16)
    w3 = jnp.zeros((HIDDEN_SIZE, IMAGE_PAD), jnp.bfloat16).at[:, :IMAGE_SIZE].set(
        params["w3"].astype(jnp.bfloat16))
    b1 = params["b1"].astype(jnp.float32)
    b2 = params["b2"].astype(jnp.float32)
    b3 = jnp.zeros((1, IMAGE_PAD), jnp.float32).at[:, :IMAGE_SIZE].set(
        params["b3"].astype(jnp.float32))
    return w1, b1, w2, b2, w3, b3


def generator_forward(x, params):
    """x: [B, LATENT_SIZE] float32.  params: dict of w1,b1,w2,b2,w3,b3 (f32, [in,out])."""
    B = x.shape[0]

    # Batch tile: up to 256 rows per grid step (MXU height on v6e/v7x); for small
    # batches just round up to the (8,128) sublane constraint.
    TILE_B = min(256, _round_up(B, 8))
    B_pad = _round_up(B, TILE_B)

    # Pad batch + latent dim, cast activations to bf16 (halves x DMA too).
    x_p = jnp.zeros((B_pad, LATENT_PAD), jnp.bfloat16)
    x_p = x_p.at[:B, :LATENT_SIZE].set(x.astype(jnp.bfloat16))

    w1, b1, w2, b2, w3, b3 = prepare_params(params)

    resident = lambda shape: pl.BlockSpec(shape, lambda i: (0, 0))   # loaded once, reused

    out_padded = pl.pallas_call(
        _generator_kernel,
        out_shape=jax.ShapeDtypeStruct((B_pad, IMAGE_PAD), jnp.float32),
        grid=(B_pad // TILE_B,),
        in_specs=[
            pl.BlockSpec((TILE_B, LATENT_PAD), lambda i: (i, 0)),    # x tile per step
            resident(w1.shape), resident(b1.shape),
            resident(w2.shape), resident(b2.shape),
            resident(w3.shape), resident(b3.shape),
        ],
        out_specs=pl.BlockSpec((TILE_B, IMAGE_PAD), lambda i: (i, 0)),
        compiler_params=pltpu.CompilerParams(
            dimension_semantics=("parallel",)),
    )(x_p, w1, b1, w2, b2, w3, b3)

    return out_padded[:B, :IMAGE_SIZE]


def init_params(key):
    """Deterministic init mirroring nn.Linear's uniform(-1/sqrt(fan_in), +1/sqrt(fan_in)).
    Weights stored transposed ([in, out]) relative to PyTorch's [out, in]."""
    def linear(key, fan_in, fan_out):
        kw, kb = jax.random.split(key)
        bound = 1.0 / jnp.sqrt(jnp.float32(fan_in))
        w = jax.random.uniform(kw, (fan_in, fan_out), jnp.float32, -bound, bound)
        b = jax.random.uniform(kb, (1, fan_out), jnp.float32, -bound, bound)
        return w, b

    k1, k2, k3 = jax.random.split(key, 3)
    w1, b1 = linear(k1, LATENT_SIZE, HIDDEN_SIZE)
    w2, b2 = linear(k2, HIDDEN_SIZE, HIDDEN_SIZE)
    w3, b3 = linear(k3, HIDDEN_SIZE, IMAGE_SIZE)
    return {"w1": w1, "b1": b1, "w2": w2, "b2": b2, "w3": w3, "b3": b3}


def generator_reference(x, params):
    """Pure-JAX f32 reference (PyTorch-equivalent forward)."""
    h1 = jnp.maximum(x @ params["w1"] + params["b1"], 0.0)
    h2 = jnp.maximum(h1 @ params["w2"] + params["b2"], 0.0)
    return jnp.tanh(h2 @ params["w3"] + params["b3"])


if __name__ == "__main__":
    key = jax.random.PRNGKey(0)
    k_params, k_x = jax.random.split(key)

    params = init_params(k_params)
    B = 8
    x = jax.random.normal(k_x, (B, LATENT_SIZE), jnp.float32)

    out = generator_forward(x, params)
    out = jax.block_until_ready(out)

    ref = generator_reference(x, params)
    assert out.shape == (B, IMAGE_SIZE)
    # bf16 matmul inputs with f32 accumulation -> loosened tolerance vs f32 ref.
    assert jnp.allclose(out, ref, atol=3e-2, rtol=0.0), (
        f"mismatch vs JAX reference, max abs diff = {jnp.max(jnp.abs(out - ref))}")

    print("KERNEL_OK")
</pallas_src>

<mosaic_0001>
module attributes {stable_mosaic.version = 11 : i64} {
  func.func @_generator_kernel(%arg0: i32, %arg1: memref<8x128xbf16, #tpu.memory_space<vmem>>, %arg2: memref<128x256xbf16, #tpu.memory_space<vmem>>, %arg3: memref<1x256xf32, #tpu.memory_space<vmem>>, %arg4: memref<256x256xbf16, #tpu.memory_space<vmem>>, %arg5: memref<1x256xf32, #tpu.memory_space<vmem>>, %arg6: memref<256x896xbf16, #tpu.memory_space<vmem>>, %arg7: memref<1x896xf32, #tpu.memory_space<vmem>>, %arg8: memref<8x896xf32, #tpu.memory_space<vmem>>) attributes {dimension_semantics = [#tpu.dimension_semantics<parallel>], iteration_bounds = array<i64: 1>, scalar_prefetch = 0 : i64, scratch_operands = 0 : i64, tpu.core_type = #tpu.core_type<tc>, window_params = [{transform_indices = @transform_0, window_bounds = array<i64: 8, 128>}, {pipeline_mode = #tpu.pipeline_mode<synchronous>, transform_indices = @transform_1, window_bounds = array<i64: 128, 256>}, {pipeline_mode = #tpu.pipeline_mode<synchronous>, transform_indices = @transform_2, window_bounds = array<i64: 1, 256>}, {pipeline_mode = #tpu.pipeline_mode<synchronous>, transform_indices = @transform_3, window_bounds = array<i64: 256, 256>}, {pipeline_mode = #tpu.pipeline_mode<synchronous>, transform_indices = @transform_4, window_bounds = array<i64: 1, 256>}, {pipeline_mode = #tpu.pipeline_mode<synchronous>, transform_indices = @transform_5, window_bounds = array<i64: 256, 896>}, {pipeline_mode = #tpu.pipeline_mode<synchronous>, transform_indices = @transform_6, window_bounds = array<i64: 1, 896>}, {transform_indices = @transform_7, window_bounds = array<i64: 8, 896>}]} {
    %c0 = arith.constant 0 : index
    %c0_0 = arith.constant 0 : index
    %0 = vector.load %arg1[%c0, %c0_0] : memref<8x128xbf16, #tpu.memory_space<vmem>>, vector<8x128xbf16>
    %c0_1 = arith.constant 0 : index
    %c0_2 = arith.constant 0 : index
    %1 = vector.load %arg2[%c0_1, %c0_2] : memref<128x256xbf16, #tpu.memory_space<vmem>>, vector<128x256xbf16>
    %cst = arith.constant dense<0.000000e+00> : vector<8x256xf32>
    %2 = tpu.matmul %0, %1, %cst {dimension_numbers = #tpu.dot_dimension_numbers<[1], [0], [0], [1], [0, 0, 1, 1], [], []>} : vector<8x128xbf16>, vector<128x256xbf16>, vector<8x256xf32> -> vector<8x256xf32>
    %c0_3 = arith.constant 0 : index
    %c0_4 = arith.constant 0 : index
    %3 = vector.load %arg3[%c0_3, %c0_4] : memref<1x256xf32, #tpu.memory_space<vmem>>, vector<1x256xf32>
    %4 = vector.broadcast %3 : vector<1x256xf32> to vector<8x256xf32>
    %5 = arith.addf %2, %4 : vector<8x256xf32>
    %cst_5 = arith.constant 0.000000e+00 : f32
    %6 = vector.broadcast %cst_5 : f32 to vector<8x256xf32>
    %7 = arith.maximumf %5, %6 : vector<8x256xf32>
    %8 = arith.truncf %7 : vector<8x256xf32> to vector<8x256xbf16>
    %c0_6 = arith.constant 0 : index
    %c0_7 = arith.constant 0 : index
    %9 = vector.load %arg4[%c0_6, %c0_7] : memref<256x256xbf16, #tpu.memory_space<vmem>>, vector<256x256xbf16>
    %cst_8 = arith.constant dense<0.000000e+00> : vector<8x256xf32>
    %10 = tpu.matmul %8, %9, %cst_8 {dimension_numbers = #tpu.dot_dimension_numbers<[1], [0], [0], [1], [0, 0, 1, 1], [], []>} : vector<8x256xbf16>, vector<256x256xbf16>, vector<8x256xf32> -> vector<8x256xf32>
    %c0_9 = arith.constant 0 : index
    %c0_10 = arith.constant 0 : index
    %11 = vector.load %arg5[%c0_9, %c0_10] : memref<1x256xf32, #tpu.memory_space<vmem>>, vector<1x256xf32>
    %12 = vector.broadcast %11 : vector<1x256xf32> to vector<8x256xf32>
    %13 = arith.addf %10, %12 : vector<8x256xf32>
    %cst_11 = arith.constant 0.000000e+00 : f32
    %14 = vector.broadcast %cst_11 : f32 to vector<8x256xf32>
    %15 = arith.maximumf %13, %14 : vector<8x256xf32>
    %16 = arith.truncf %15 : vector<8x256xf32> to vector<8x256xbf16>
    %c0_12 = arith.constant 0 : index
    %c0_13 = arith.constant 0 : index
    %17 = vector.load %arg6[%c0_12, %c0_13] : memref<256x896xbf16, #tpu.memory_space<vmem>>, vector<256x896xbf16>
    %cst_14 = arith.constant dense<0.000000e+00> : vector<8x896xf32>
    %18 = tpu.matmul %16, %17, %cst_14 {dimension_numbers = #tpu.dot_dimension_numbers<[1], [0], [0], [1], [0, 0, 1, 1], [], []>} : vector<8x256xbf16>, vector<256x896xbf16>, vector<8x896xf32> -> vector<8x896xf32>
    %c0_15 = arith.constant 0 : index
    %c0_16 = arith.constant 0 : index
    %19 = vector.load %arg7[%c0_15, %c0_16] : memref<1x896xf32, #tpu.memory_space<vmem>>, vector<1x896xf32>
    %20 = vector.broadcast %19 : vector<1x896xf32> to vector<8x896xf32>
    %21 = arith.addf %18, %20 : vector<8x896xf32>
    %22 = math.tanh %21 : vector<8x896xf32>
    %c0_17 = arith.constant 0 : index
    %c0_18 = arith.constant 0 : index
    %23 = vector.load %arg8[%c0_17, %c0_18] : memref<8x896xf32, #tpu.memory_space<vmem>>, vector<8x896xf32>
    tpu.vector_store %arg8[%c0_17, %c0_18], %22 {strides = array<i32>} : memref<8x896xf32, #tpu.memory_space<vmem>>, vector<8x896xf32>,
    return
  }
  func.func @transform_0(%arg0: i32) -> (i32, i32) {
    %c0_i32 = arith.constant 0 : i32
    %c0_i32_0 = arith.constant 0 : i32
    return %arg0, %c0_i32 : i32, i32
  }
  func.func @transform_1(%arg0: i32) -> (i32, i32) {
    %c0_i32 = arith.constant 0 : i32
    %c0_i32_0 = arith.constant 0 : i32
    %c0_i32_1 = arith.constant 0 : i32
    return %c0_i32, %c0_i32_0 : i32, i32
  }
  func.func @transform_2(%arg0: i32) -> (i32, i32) {
    %c0_i32 = arith.constant 0 : i32
    %c0_i32_0 = arith.constant 0 : i32
    %c0_i32_1 = arith.constant 0 : i32
    return %c0_i32, %c0_i32_0 : i32, i32
  }
  func.func @transform_3(%arg0: i32) -> (i32, i32) {
    %c0_i32 = arith.constant 0 : i32
    %c0_i32_0 = arith.constant 0 : i32
    %c0_i32_1 = arith.constant 0 : i32
    return %c0_i32, %c0_i32_0 : i32, i32
  }
  func.func @transform_4(%arg0: i32) -> (i32, i32) {
    %c0_i32 = arith.constant 0 : i32
    %c0_i32_0 = arith.constant 0 : i32
    %c0_i32_1 = arith.constant 0 : i32
    return %c0_i32, %c0_i32_0 : i32, i32
  }
  func.func @transform_5(%arg0: i32) -> (i32, i32) {
    %c0_i32 = arith.constant 0 : i32
    %c0_i32_0 = arith.constant 0 : i32
    %c0_i32_1 = arith.constant 0 : i32
    return %c0_i32, %c0_i32_0 : i32, i32
  }
  func.func @transform_6(%arg0: i32) -> (i32, i32) {
    %c0_i32 = arith.constant 0 : i32
    %c0_i32_0 = arith.constant 0 : i32
    %c0_i32_1 = arith.constant 0 : i32
    return %c0_i32, %c0_i32_0 : i32, i32
  }
  func.func @transform_7(%arg0: i32) -> (i32, i32) {
    %c0_i32 = arith.constant 0 : i32
    %c0_i32_0 = arith.constant 0 : i32
    return %arg0, %c0_i32 : i32, i32
  }
}

</mosaic_0001>

<llo_original>
// kernel: tpu_custom_call.1
$region0: #{tpu_custom_call.1}
  #allocation0 [shape = 'u32[]', space=smem, size = 0x4, offset = 0x4, fixed_abs, tag = 'smem constant byte address 0x4 - core index']
  #allocation1 [shape = 'u32[144,128]{1,0:T(1,128)}', space=vmem, size = 0x12000, scoped, tag = 'internal scratch']
  %s0 = inlined_call_operand.hbm [shape: bf16[8,128], index: 0, kind: input, shape index: {}]
  %s1 = inlined_call_operand.hbm [shape: bf16[128,256], index: 1, kind: input, shape index: {}]
  %s2 = inlined_call_operand.vmem [shape: f32[1,256], index: 2, kind: input, shape index: {}]
  %s3 = inlined_call_operand.hbm [shape: bf16[256,256], index: 3, kind: input, shape index: {}]
  %s4 = inlined_call_operand.vmem [shape: f32[1,256], index: 4, kind: input, shape index: {}]
  %s5 = inlined_call_operand.hbm [shape: bf16[256,896], index: 5, kind: input, shape index: {}]
  %s6 = inlined_call_operand.vmem [shape: f32[1,896], index: 6, kind: input, shape index: {}]
  %s7 = inlined_call_operand.hbm [shape: f32[8,896], index: 7, kind: output, shape index: {}]
  %s8 = sld [smem:[#allocation0]]
  $region54: #{tpu_custom_call.1} parent=0
    _
  %s10 = ssub.s32 1, %s8
  %s11 = scalar_select 0, %s10, %s8
  $region1: #{tpu_custom_call.1} parent=0
    #allocation2 [shape = 'u8[2048]{0}', space=vmem, size = 0x800, scoped, tag = 'input window, operand 0, single buffered']
    #allocation3 [shape = 's32[1]{0}', space=sflag, size = 0x4, scoped, tag = 'scoped memory for tpu_custom_call.1']
    #allocation4 [shape = 's32[1]{0}', space=sflag, size = 0x4, scoped, tag = 'scoped memory for tpu_custom_call.1']
    #allocation5 [shape = 'u8[65536]{0}', space=vmem, size = 0x10000, scoped, tag = 'input window, operand 1, single buffered']
    #allocation6 [shape = 's32[1]{0}', space=sflag, size = 0x4, scoped, tag = 'scoped memory for tpu_custom_call.1']
    #allocation7 [shape = 'u8[131072]{0}', space=vmem, size = 0x20000, scoped, tag = 'input window, operand 3, single buffered']
    #allocation8 [shape = 'u8[458752]{0}', space=vmem, size = 0x70000, scoped, tag = 'input window, operand 5, single buffered']
    #allocation9 [shape = 's32[1]{0}', space=sflag, size = 0x4, scoped, tag = 'scoped memory for tpu_custom_call.1']
    #allocation10 [shape = 'u8[28672]{0}', space=vmem, size = 0x7000, scoped, tag = 'output window, operand 0, single buffered']
    %12 = vsyncpa [#allocation3], 0
    %13 = vsyncpa [#allocation6], 0
    %14 = vsyncpa [#allocation9], 0
    %15 = vsyncpa [#allocation4], 0
    // Predicated region
    $region2: #{tpu_custom_call.1} parent=1 // pred_check
      _
    $region3: #{tpu_custom_call.1} parent=1 // pred_check_branch
      %17 = sbr.rel (0) target = $region5
    $region4: #{tpu_custom_call.1} parent=1 // pred_region
      %s19 = ssub.s32 64, 64
      %20 = vsyncadd [#allocation3], %s19
      %s22 = sshll.u32 [#allocation2], 4
      %s23 = int_to_ptr.vmem [resolvable:$true] %s22
      %25 = dma.hbm_to_vmem [thread:$0]  %s0, 64, %s23, [#allocation3]
    $region5: #{tpu_custom_call.1} parent=1 // pred_fallthru
      _
    // Predicated region
    $region6: #{tpu_custom_call.1} parent=1 // pred_check
      _
    $region7: #{tpu_custom_call.1} parent=1 // pred_check_branch
      %27 = sbr.rel (0) target = $region9
    $region8: #{tpu_custom_call.1} parent=1 // pred_region
      %s29 = ssub.s32 2048, 2048
      %30 = vsyncadd [#allocation6], %s29
      %s31 = sshll.u32 [#allocation5], 4
      %s32 = int_to_ptr.vmem [resolvable:$true] %s31
      %37 = dma.hbm_to_vmem [thread:$0]  %s1, 2048, %s32, [#allocation6], 128, 128, 8
    $region9: #{tpu_custom_call.1} parent=1 // pred_fallthru
      _
    // Predicated region
    $region10: #{tpu_custom_call.1} parent=1 // pred_check
      _
    $region11: #{tpu_custom_call.1} parent=1 // pred_check_branch
      %39 = sbr.rel (0) target = $region13
    $region12: #{tpu_custom_call.1} parent=1 // pred_region
      _
    $region13: #{tpu_custom_call.1} parent=1 // pred_fallthru
      _
    // Predicated region
    $region14: #{tpu_custom_call.1} parent=1 // pred_check
      _
    $region15: #{tpu_custom_call.1} parent=1 // pred_check_branch
      %41 = sbr.rel (0) target = $region17
    $region16: #{tpu_custom_call.1} parent=1 // pred_region
      %s43 = ssub.s32 4096, 4096
      %44 = vsyncadd [#allocation6], %s43
      %s45 = sshll.u32 [#allocation7], 4
      %s46 = int_to_ptr.vmem [resolvable:$true] %s45
      %51 = dma.hbm_to_vmem [thread:$0]  %s3, 4096, %s46, [#allocation6], 128, 128, 8
    $region17: #{tpu_custom_call.1} parent=1 // pred_fallthru
      _
    // Predicated region
    $region18: #{tpu_custom_call.1} parent=1 // pred_check
      _
    $region19: #{tpu_custom_call.1} parent=1 // pred_check_branch
      %53 = sbr.rel (0) target = $region21
    $region20: #{tpu_custom_call.1} parent=1 // pred_region
      _
    $region21: #{tpu_custom_call.1} parent=1 // pred_fallthru
      _
    // Predicated region
    $region22: #{tpu_custom_call.1} parent=1 // pred_check
      _
    $region23: #{tpu_custom_call.1} parent=1 // pred_check_branch
      %55 = sbr.rel (0) target = $region25
    $region24: #{tpu_custom_call.1} parent=1 // pred_region
      %s57 = ssub.s32 14336, 14336
      %58 = vsyncadd [#allocation9], %s57
      %s59 = sshll.u32 [#allocation8], 4
      %s60 = int_to_ptr.vmem [resolvable:$true] %s59
      %65 = dma.hbm_to_vmem [thread:$0]  %s5, 14336, %s60, [#allocation9], 448, 448, 28
    $region25: #{tpu_custom_call.1} parent=1 // pred_fallthru
      _
    // Predicated region
    $region26: #{tpu_custom_call.1} parent=1 // pred_check
      _
    $region27: #{tpu_custom_call.1} parent=1 // pred_check_branch
      %67 = sbr.rel (0) target = $region29
    $region28: #{tpu_custom_call.1} parent=1 // pred_region
      _
    $region29: #{tpu_custom_call.1} parent=1 // pred_fallthru
      _
    // Predicated region
    $region30: #{tpu_custom_call.1} parent=1 // pred_check
      _
    $region31: #{tpu_custom_call.1} parent=1 // pred_check_branch
      %69 = sbr.rel (0) target = $region33
    $region32: #{tpu_custom_call.1} parent=1 // pred_region
      %70 = dma.done [#allocation3], 64
    $region33: #{tpu_custom_call.1} parent=1 // pred_fallthru
      _
    // Predicated region
    $region34: #{tpu_custom_call.1} parent=1 // pred_check
      _
    $region35: #{tpu_custom_call.1} parent=1 // pred_check_branch
      %72 = sbr.rel (0) target = $region37
    $region36: #{tpu_custom_call.1} parent=1 // pred_region
      %73 = dma.done [#allocation6], 2048
    $region37: #{tpu_custom_call.1} parent=1 // pred_fallthru
      _
    // Predicated region
    $region38: #{tpu_custom_call.1} parent=1 // pred_check
      _
    $region39: #{tpu_custom_call.1} parent=1 // pred_check_branch
      %75 = sbr.rel (0) target = $region41
    $region40: #{tpu_custom_call.1} parent=1 // pred_region
      %76 = dma.done [#allocation6], 4096
    $region41: #{tpu_custom_call.1} parent=1 // pred_fallthru
      _
    // Predicated region
    $region42: #{tpu_custom_call.1} parent=1 // pred_check
      _
    $region43: #{tpu_custom_call.1} parent=1 // pred_check_branch
      %78 = sbr.rel (0) target = $region45
    $region44: #{tpu_custom_call.1} parent=1 // pred_region
      %79 = dma.done [#allocation9], 14336
    $region45: #{tpu_custom_call.1} parent=1 // pred_fallthru
      _
    %v81 = vld [vmem:[#allocation2] sm:$0xf]
    %v82 = vld [vmem:[#allocation5] sm:$0xff]
    %v83 = vld [vmem:[#allocation5 + $0x8] sm:$0xff]
    %v84 = vld [vmem:[#allocation5 + $0x10] sm:$0xff]
    %v85 = vld [vmem:[#allocation5 + $0x18] sm:$0xff]
    %v86 = vld [vmem:[#allocation5 + $0x20] sm:$0xff]
    %v87 = vld [vmem:[#allocation5 + $0x28] sm:$0xff]
    %v88 = vld [vmem:[#allocation5 + $0x30] sm:$0xff]
    %v89 = vld [vmem:[#allocation5 + $0x38] sm:$0xff]
    %v90 = vld [vmem:[#allocation5 + $0x40] sm:$0xff]
    %v91 = vld [vmem:[#allocation5 + $0x48] sm:$0xff]
    %v92 = vld [vmem:[#allocation5 + $0x50] sm:$0xff]
    %v93 = vld [vmem:[#allocation5 + $0x58] sm:$0xff]
    %v94 = vld [vmem:[#allocation5 + $0x60] sm:$0xff]
    %v95 = vld [vmem:[#allocation5 + $0x68] sm:$0xff]
    %v96 = vld [vmem:[#allocation5 + $0x70] sm:$0xff]
    %v97 = vld [vmem:[#allocation5 + $0x78] sm:$0xff]
    %v98 = vld [vmem:[%s2] sm:$0x3]
    %v100 = vlaneseq
    %v101 = vshrl.u32 %v100, 7
    %v102 = vsub.s32 0, %v101
    %v103 = vrot.slane %v98, %v102
    %v104 = vlaneseq
    %v105 = vshrl.u32 %v104, 7
    %v106 = vsub.s32 1, %v105
    %v107 = vrot.slane %v98, %v106
    %v126 = vunpack.c.l.b16 %v82
    %v127 = vunpack.c.h.b16 %v82
    %v128 = vunpack.c.l.b16 %v83
    %v129 = vunpack.c.h.b16 %v83
    %v130 = vunpack.c.l.b16 %v84
    %v131 = vunpack.c.h.b16 %v84
    %v132 = vunpack.c.l.b16 %v85
    %v133 = vunpack.c.h.b16 %v85
    %v134 = vunpack.c.l.b16 %v86
    %v135 = vunpack.c.h.b16 %v86
    %v136 = vunpack.c.l.b16 %v87
    %v137 = vunpack.c.h.b16 %v87
    %v138 = vunpack.c.l.b16 %v88
    %v139 = vunpack.c.h.b16 %v88
    %v140 = vunpack.c.l.b16 %v89
    %v141 = vunpack.c.h.b16 %v89
    %v142 = vunpack.c.l.b16 %v90
    %v143 = vunpack.c.h.b16 %v90
    %v144 = vunpack.c.l.b16 %v91
    %v145 = vunpack.c.h.b16 %v91
    %v146 = vunpack.c.l.b16 %v92
    %v147 = vunpack.c.h.b16 %v92
    %v148 = vunpack.c.l.b16 %v93
    %v149 = vunpack.c.h.b16 %v93
    %v150 = vunpack.c.l.b16 %v94
    %v151 = vunpack.c.h.b16 %v94
    %v152 = vunpack.c.l.b16 %v95
    %v153 = vunpack.c.h.b16 %v95
    %v154 = vunpack.c.l.b16 %v96
    %v155 = vunpack.c.h.b16 %v96
    %v156 = vunpack.c.l.b16 %v97
    %v157 = vunpack.c.h.b16 %v97
    %v158 = vpack.c.b16 %v128, %v126
    %v159 = vpack.c.b16 %v129, %v127
    %v160 = vpack.c.b16 %v132, %v130
    %v161 = vpack.c.b16 %v133, %v131
    %v162 = vpack.c.b16 %v136, %v134
    %v163 = vpack.c.b16 %v137, %v135
    %v164 = vpack.c.b16 %v140, %v138
    %v165 = vpack.c.b16 %v141, %v139
    %v166 = vpack.c.b16 %v144, %v142
    %v167 = vpack.c.b16 %v145, %v143
    %v168 = vpack.c.b16 %v148, %v146
    %v169 = vpack.c.b16 %v149, %v147
    %v170 = vpack.c.b16 %v152, %v150
    %v171 = vpack.c.b16 %v153, %v151
    %v172 = vpack.c.b16 %v156, %v154
    %v173 = vpack.c.b16 %v157, %v155
    %190 = vmatprep.subr.bf16.mxu0 %v159
    %191 = vmatpush1.bf16.msra.mxu0 %v158
    %192 = vmatprep.subr.bf16.mxu0 %v161
    %193 = vmatpush1.bf16.msra.mxu0 %v160
    %194 = vmatprep.subr.bf16.mxu0 %v163
    %195 = vmatpush1.bf16.msra.mxu0 %v162
    %196 = vmatprep.subr.bf16.mxu0 %v165
    %197 = vmatpush1.bf16.msra.mxu0 %v164
    %198 = vmatprep.subr.bf16.mxu0 %v167
    %199 = vmatpush1.bf16.msra.mxu0 %v166
    %200 = vmatprep.subr.bf16.mxu0 %v169
    %201 = vmatpush1.bf16.msra.mxu0 %v168
    %202 = vmatprep.subr.bf16.mxu0 %v171
    %203 = vmatpush1.bf16.msra.mxu0 %v170
    %204 = vmatprep.subr.bf16.mxu0 %v173
    %205 = vmatpush1.bf16.msra.mxu0 %v172
    %206 = vmatprep.subr.bf16.mxu0 0
    %207 = vmatpush1.bf16.msra.mxu0 0
    %208 = vmatprep.subr.bf16.mxu0 0
    %209 = vmatpush1.bf16.msra.mxu0 0
    %210 = vmatprep.subr.bf16.mxu0 0
    %211 = vmatpush1.bf16.msra.mxu0 0
    %212 = vmatprep.subr.bf16.mxu0 0
    %213 = vmatpush1.bf16.msra.mxu0 0
    %214 = vmatprep.subr.bf16.mxu0 0
    %215 = vmatpush1.bf16.msra.mxu0 0
    %216 = vmatprep.subr.bf16.mxu0 0
    %217 = vmatpush1.bf16.msra.mxu0 0
    %218 = vmatprep.subr.bf16.mxu0 0
    %219 = vmatpush1.bf16.msra.mxu0 0
    %220 = vmatprep.subr.bf16.mxu0 0
    %221 = vmatpush1.bf16.msra.mxu0 0
    %222 = vmatprep.mubr.bf16.mxu0 0
    %223 = vmatmul.mubr.bf16.gmra.mrb[0].mxu0 %v81
    %v224 = vpop.f32.mrb[0].mxu0
    %v225 = vadd.f32 %v103, %v224
    %v226 = vpop.f32.mrb[0].mxu0
    %v227 = vadd.f32 %v107, %v226
    %v228 = vpop.f32.mrb[0].mxu0
    %v229 = vpop.f32.mrb[0].mxu0
    %230 = vdwg.mxu0
    %v231 = vmax.f32 %v225, 0.0
    %v232 = vmax.f32 %v227, 0.0
    %v233 = vpack.c.bf16 %v231, %v231
    %v234 = vpack.c.bf16 %v232, %v232
    %v235 = vld [vmem:[#allocation7] sm:$0xff]
    %v236 = vld [vmem:[#allocation7 + $0x8] sm:$0xff]
    %v237 = vld [vmem:[#allocation7 + $0x10] sm:$0xff]
    %v238 = vld [vmem:[#allocation7 + $0x18] sm:$0xff]
    %v239 = vld [vmem:[#allocation7 + $0x20] sm:$0xff]
    %v240 = vld [vmem:[#allocation7 + $0x28] sm:$0xff]
    %v241 = vld [vmem:[#allocation7 + $0x30] sm:$0xff]
    %v242 = vld [vmem:[#allocation7 + $0x38] sm:$0xff]
    %v243 = vld [vmem:[#allocation7 + $0x40] sm:$0xff]
    %v244 = vld [vmem:[#allocation7 + $0x48] sm:$0xff]
    %v245 = vld [vmem:[#allocation7 + $0x50] sm:$0xff]
    %v246 = vld [vmem:[#allocation7 + $0x58] sm:$0xff]
    %v247 = vld [vmem:[#allocation7 + $0x60] sm:$0xff]
    %v248 = vld [vmem:[#allocation7 + $0x68] sm:$0xff]
    %v249 = vld [vmem:[#allocation7 + $0x70] sm:$0xff]
    %v250 = vld [vmem:[#allocation7 + $0x78] sm:$0xff]
    %v251 = vld [vmem:[#allocation7 + $0x80] sm:$0xff]
    %v252 = vld [vmem:[#allocation7 + $0x88] sm:$0xff]
    %v253 = vld [vmem:[#allocation7 + $0x90] sm:$0xff]
    %v254 = vld [vmem:[#allocation7 + $0x98] sm:$0xff]
    %v255 = vld [vmem:[#allocation7 + $0xa0] sm:$0xff]
    %v256 = vld [vmem:[#allocation7 + $0xa8] sm:$0xff]
    %v257 = vld [vmem:[#allocation7 + $0xb0] sm:$0xff]
    %v258 = vld [vmem:[#allocation7 + $0xb8] sm:$0xff]
    %v259 = vld [vmem:[#allocation7 + $0xc0] sm:$0xff]
    %v260 = vld [vmem:[#allocation7 + $0xc8] sm:$0xff]
    %v261 = vld [vmem:[#allocation7 + $0xd0] sm:$0xff]
    %v262 = vld [vmem:[#allocation7 + $0xd8] sm:$0xff]
    %v263 = vld [vmem:[#allocation7 + $0xe0] sm:$0xff]
    %v264 = vld [vmem:[#allocation7 + $0xe8] sm:$0xff]
    %v265 = vld [vmem:[#allocation7 + $0xf0] sm:$0xff]
    %v266 = vld [vmem:[#allocation7 + $0xf8] sm:$0xff]
    %v267 = vld [vmem:[%s4] sm:$0x3]
    %v269 = vlaneseq
    %v270 = vshrl.u32 %v269, 7
    %v271 = vsub.s32 0, %v270
    %v272 = vrot.slane %v267, %v271
    %v273 = vlaneseq
    %v274 = vshrl.u32 %v273, 7
    %v275 = vsub.s32 1, %v274
    %v276 = vrot.slane %v267, %v275
    %v311 = vunpack.c.l.b16 %v235
    %v312 = vunpack.c.h.b16 %v235
    %v313 = vunpack.c.l.b16 %v236
    %v314 = vunpack.c.h.b16 %v236
    %v315 = vunpack.c.l.b16 %v237
    %v316 = vunpack.c.h.b16 %v237
    %v317 = vunpack.c.l.b16 %v238
    %v318 = vunpack.c.h.b16 %v238
    %v319 = vunpack.c.l.b16 %v239
    %v320 = vunpack.c.h.b16 %v239
    %v321 = vunpack.c.l.b16 %v240
    %v322 = vunpack.c.h.b16 %v240
    %v323 = vunpack.c.l.b16 %v241
    %v324 = vunpack.c.h.b16 %v241
    %v325 = vunpack.c.l.b16 %v242
    %v326 = vunpack.c.h.b16 %v242
    %v327 = vunpack.c.l.b16 %v243
    %v328 = vunpack.c.h.b16 %v243
    %v329 = vunpack.c.l.b16 %v244
    %v330 = vunpack.c.h.b16 %v244
    %v331 = vunpack.c.l.b16 %v245
    %v332 = vunpack.c.h.b16 %v245
    %v333 = vunpack.c.l.b16 %v246
    %v334 = vunpack.c.h.b16 %v246
    %v335 = vunpack.c.l.b16 %v247
    %v336 = vunpack.c.h.b16 %v247
    %v337 = vunpack.c.l.b16 %v248
    %v338 = vunpack.c.h.b16 %v248
    %v339 = vunpack.c.l.b16 %v249
    %v340 = vunpack.c.h.b16 %v249
    %v341 = vunpack.c.l.b16 %v250
    %v342 = vunpack.c.h.b16 %v250
    %v343 = vunpack.c.l.b16 %v251
    %v344 = vunpack.c.h.b16 %v251
    %v345 = vunpack.c.l.b16 %v252
    %v346 = vunpack.c.h.b16 %v252
    %v347 = vunpack.c.l.b16 %v253
    %v348 = vunpack.c.h.b16 %v253
    %v349 = vunpack.c.l.b16 %v254
    %v350 = vunpack.c.h.b16 %v254
    %v351 = vunpack.c.l.b16 %v255
    %v352 = vunpack.c.h.b16 %v255
    %v353 = vunpack.c.l.b16 %v256
    %v354 = vunpack.c.h.b16 %v256
    %v355 = vunpack.c.l.b16 %v257
    %v356 = vunpack.c.h.b16 %v257
    %v357 = vunpack.c.l.b16 %v258
    %v358 = vunpack.c.h.b16 %v258
    %v359 = vunpack.c.l.b16 %v259
    %v360 = vunpack.c.h.b16 %v259
    %v361 = vunpack.c.l.b16 %v260
    %v362 = vunpack.c.h.b16 %v260
    %v363 = vunpack.c.l.b16 %v261
    %v364 = vunpack.c.h.b16 %v261
    %v365 = vunpack.c.l.b16 %v262
    %v366 = vunpack.c.h.b16 %v262
    %v367 = vunpack.c.l.b16 %v263
    %v368 = vunpack.c.h.b16 %v263
    %v369 = vunpack.c.l.b16 %v264
    %v370 = vunpack.c.h.b16 %v264
    %v371 = vunpack.c.l.b16 %v265
    %v372 = vunpack.c.h.b16 %v265
    %v373 = vunpack.c.l.b16 %v266
    %v374 = vunpack.c.h.b16 %v266
    %v375 = vpack.c.b16 %v313, %v311
    %v376 = vpack.c.b16 %v314, %v312
    %v377 = vpack.c.b16 %v317, %v315
    %v378 = vpack.c.b16 %v318, %v316
    %v379 = vpack.c.b16 %v321, %v319
    %v380 = vpack.c.b16 %v322, %v320
    %v381 = vpack.c.b16 %v325, %v323
    %v382 = vpack.c.b16 %v326, %v324
    %v383 = vpack.c.b16 %v329, %v327
    %v384 = vpack.c.b16 %v330, %v328
    %v385 = vpack.c.b16 %v333, %v331
    %v386 = vpack.c.b16 %v334, %v332
    %v387 = vpack.c.b16 %v337, %v335
    %v388 = vpack.c.b16 %v338, %v336
    %v389 = vpack.c.b16 %v341, %v339
    %v390 = vpack.c.b16 %v342, %v340
    %v391 = vpack.c.b16 %v345, %v343
    %v392 = vpack.c.b16 %v346, %v344
    %v393 = vpack.c.b16 %v349, %v347
    %v394 = vpack.c.b16 %v350, %v348
    %v395 = vpack.c.b16 %v353, %v351
    %v396 = vpack.c.b16 %v354, %v352
    %v397 = vpack.c.b16 %v357, %v355
    %v398 = vpack.c.b16 %v358, %v356
    %v399 = vpack.c.b16 %v361, %v359
    %v400 = vpack.c.b16 %v362, %v360
    %v401 = vpack.c.b16 %v365, %v363
    %v402 = vpack.c.b16 %v366, %v364
    %v403 = vpack.c.b16 %v369, %v367
    %v404 = vpack.c.b16 %v370, %v368
    %v405 = vpack.c.b16 %v373, %v371
    %v406 = vpack.c.b16 %v374, %v372
    %439 = vmatprep.subr.bf16.mxu0 %v376
    %440 = vmatpush1.bf16.msra.mxu0 %v375
    %441 = vmatprep.subr.bf16.mxu0 %v378
    %442 = vmatpush1.bf16.msra.mxu0 %v377
    %443 = vmatprep.subr.bf16.mxu0 %v380
    %444 = vmatpush1.bf16.msra.mxu0 %v379
    %445 = vmatprep.subr.bf16.mxu0 %v382
    %446 = vmatpush1.bf16.msra.mxu0 %v381
    %447 = vmatprep.subr.bf16.mxu0 %v384
    %448 = vmatpush1.bf16.msra.mxu0 %v383
    %449 = vmatprep.subr.bf16.mxu0 %v386
    %450 = vmatpush1.bf16.msra.mxu0 %v385
    %451 = vmatprep.subr.bf16.mxu0 %v388
    %452 = vmatpush1.bf16.msra.mxu0 %v387
    %453 = vmatprep.subr.bf16.mxu0 %v390
    %454 = vmatpush1.bf16.msra.mxu0 %v389
    %455 = vmatprep.subr.bf16.mxu0 %v392
    %456 = vmatpush1.bf16.msra.mxu0 %v391
    %457 = vmatprep.subr.bf16.mxu0 %v394
    %458 = vmatpush1.bf16.msra.mxu0 %v393
    %459 = vmatprep.subr.bf16.mxu0 %v396
    %460 = vmatpush1.bf16.msra.mxu0 %v395
    %461 = vmatprep.subr.bf16.mxu0 %v398
    %462 = vmatpush1.bf16.msra.mxu0 %v397
    %463 = vmatprep.subr.bf16.mxu0 %v400
    %464 = vmatpush1.bf16.msra.mxu0 %v399
    %465 = vmatprep.subr.bf16.mxu0 %v402
    %466 = vmatpush1.bf16.msra.mxu0 %v401
    %467 = vmatprep.subr.bf16.mxu0 %v404
    %468 = vmatpush1.bf16.msra.mxu0 %v403
    %469 = vmatprep.subr.bf16.mxu0 %v406
    %470 = vmatpush1.bf16.msra.mxu0 %v405
    %471 = vmatprep.mubr.bf16.mxu0 %v234
    %472 = vmatmul.mubr.bf16.gmra.mrb[0].mxu0 %v233
    %v473 = vpop.f32.mrb[0].mxu0
    %v474 = vadd.f32 %v272, %v473
    %v475 = vpop.f32.mrb[0].mxu0
    %v476 = vadd.f32 %v276, %v475
    %v477 = vpop.f32.mrb[0].mxu0
    %v478 = vpop.f32.mrb[0].mxu0
    %479 = vdwg.mxu0
    %v480 = vmax.f32 %v474, 0.0
    %v481 = vmax.f32 %v476, 0.0
    %v482 = vpack.c.bf16 %v480, %v480
    %v483 = vpack.c.bf16 %v481, %v481
    %v484 = vld [vmem:[#allocation8] sm:$0xff]
    %v485 = vld [vmem:[#allocation8 + $0x8] sm:$0xff]
    %v486 = vld [vmem:[#allocation8 + $0x10] sm:$0xff]
    %v487 = vld [vmem:[#allocation8 + $0x18] sm:$0xf]
    %v488 = vld [vmem:[#allocation8 + $0x1c] sm:$0xff]
    %v489 = vld [vmem:[#allocation8 + $0x24] sm:$0xff]
    %v490 = vld [vmem:[#allocation8 + $0x2c] sm:$0xff]
    %v491 = vld [vmem:[#allocation8 + $0x34] sm:$0xf]
    %v492 = vld [vmem:[#allocation8 + $0x38] sm:$0xff]
    %v493 = vld [vmem:[#allocation8 + $0x40] sm:$0xff]
    %v494 = vld [vmem:[#allocation8 + $0x48] sm:$0xff]
    %v495 = vld [vmem:[#allocation8 + $0x50] sm:$0xf]
    %v496 = vld [vmem:[#allocation8 + $0x54] sm:$0xff]
    %v497 = vld [vmem:[#allocation8 + $0x5c] sm:$0xff]
    %v498 = vld [vmem:[#allocation8 + $0x64] sm:$0xff]
    %v499 = vld [vmem:[#allocation8 + $0x6c] sm:$0xf]
    %v500 = vld [vmem:[#allocation8 + $0x70] sm:$0xff]
    %v501 = vld [vmem:[#allocation8 + $0x78] sm:$0xff]
    %v502 = vld [vmem:[#allocation8 + $0x80] sm:$0xff]
    %v503 = vld [vmem:[#allocation8 + $0x88] sm:$0xf]
    %v504 = vld [vmem:[#allocation8 + $0x8c] sm:$0xff]
    %v505 = vld [vmem:[#allocation8 + $0x94] sm:$0xff]
    %v506 = vld [vmem:[#allocation8 + $0x9c] sm:$0xff]
    %v507 = vld [vmem:[#allocation8 + $0xa4] sm:$0xf]
    %v508 = vld [vmem:[#allocation8 + $0xa8] sm:$0xff]
    %v509 = vld [vmem:[#allocation8 + $0xb0] sm:$0xff]
    %v510 = vld [vmem:[#allocation8 + $0xb8] sm:$0xff]
    %v511 = vld [vmem:[#allocation8 + $0xc0] sm:$0xf]
    %v512 = vld [vmem:[#allocation8 + $0xc4] sm:$0xff]
    %v513 = vld [vmem:[#allocation8 + $0xcc] sm:$0xff]
    %v514 = vld [vmem:[#allocation8 + $0xd4] sm:$0xff]
    %v515 = vld [vmem:[#allocation8 + $0xdc] sm:$0xf]
    %v516 = vld [vmem:[#allocation8 + $0xe0] sm:$0xff]
    %v517 = vld [vmem:[#allocation8 + $0xe8] sm:$0xff]
    %v518 = vld [vmem:[#allocation8 + $0xf0] sm:$0xff]
    %v519 = vld [vmem:[#allocation8 + $0xf8] sm:$0xf]
    %v520 = vld [vmem:[#allocation8 + $0xfc] sm:$0xff]
    %v521 = vld [vmem:[#allocation8 + $0x104] sm:$0xff]
    %v522 = vld [vmem:[#allocation8 + $0x10c] sm:$0xff]
    %v523 = vld [vmem:[#allocation8 + $0x114] sm:$0xf]
    %v524 = vld [vmem:[#allocation8 + $0x118] sm:$0xff]
    %v525 = vld [vmem:[#allocation8 + $0x120] sm:$0xff]
    %v526 = vld [vmem:[#allocation8 + $0x128] sm:$0xff]
    %v527 = vld [vmem:[#allocation8 + $0x130] sm:$0xf]
    %v528 = vld [vmem:[#allocation8 + $0x134] sm:$0xff]
    %v529 = vld [vmem:[#allocation8 + $0x13c] sm:$0xff]
    %v530 = vld [vmem:[#allocation8 + $0x144] sm:$0xff]
    %v531 = vld [vmem:[#allocation8 + $0x14c] sm:$0xf]
    %v532 = vld [vmem:[#allocation8 + $0x150] sm:$0xff]
    %v533 = vld [vmem:[#allocation8 + $0x158] sm:$0xff]
    %v534 = vld [vmem:[#allocation8 + $0x160] sm:$0xff]
    %v535 = vld [vmem:[#allocation8 + $0x168] sm:$0xf]
    %v536 = vld [vmem:[#allocation8 + $0x16c] sm:$0xff]
    %v537 = vld [vmem:[#allocation8 + $0x174] sm:$0xff]
    %v538 = vld [vmem:[#allocation8 + $0x17c] sm:$0xff]
    %v539 = vld [vmem:[#allocation8 + $0x184] sm:$0xf]
    %v540 = vld [vmem:[#allocation8 + $0x188] sm:$0xff]
    %v541 = vld [vmem:[#allocation8 + $0x190] sm:$0xff]
    %v542 = vld [vmem:[#allocation8 + $0x198] sm:$0xff]
    %v543 = vld [vmem:[#allocation8 + $0x1a0] sm:$0xf]
    %v544 = vld [vmem:[#allocation8 + $0x1a4] sm:$0xff]
    %v545 = vld [vmem:[#allocation8 + $0x1ac] sm:$0xff]
    %v546 = vld [vmem:[#allocation8 + $0x1b4] sm:$0xff]
    %v547 = vld [vmem:[#allocation8 + $0x1bc] sm:$0xf]
    %v548 = vld [vmem:[#allocation8 + $0x1c0] sm:$0xff]
    %v549 = vld [vmem:[#allocation8 + $0x1c8] sm:$0xff]
    %v550 = vld [vmem:[#allocation8 + $0x1d0] sm:$0xff]
    %v551 = vld [vmem:[#allocation8 + $0x1d8] sm:$0xf]
    %v552 = vld [vmem:[#allocation8 + $0x1dc] sm:$0xff]
    %v553 = vld [vmem:[#allocation8 + $0x1e4] sm:$0xff]
    %v554 = vld [vmem:[#allocation8 + $0x1ec] sm:$0xff]
    %v555 = vld [vmem:[#allocation8 + $0x1f4] sm:$0xf]
    %v556 = vld [vmem:[#allocation8 + $0x1f8] sm:$0xff]
    %v557 = vld [vmem:[#allocation8 + $0x200] sm:$0xff]
    %v558 = vld [vmem:[#allocation8 + $0x208] sm:$0xff]
    %v559 = vld [vmem:[#allocation8 + $0x210] sm:$0xf]
    %v560 = vld [vmem:[#allocation8 + $0x214] sm:$0xff]
    %v561 = vld [vmem:[#allocation8 + $0x21c] sm:$0xff]
    %v562 = vld [vmem:[#allocation8 + $0x224] sm:$0xff]
    %v563 = vld [vmem:[#allocation8 + $0x22c] sm:$0xf]
    %v564 = vld [vmem:[#allocation8 + $0x230] sm:$0xff]
    %v565 = vld [vmem:[#allocation8 + $0x238] sm:$0xff]
    %v566 = vld [vmem:[#allocation8 + $0x240] sm:$0xff]
    %v567 = vld [vmem:[#allocation8 + $0x248] sm:$0xf]
    %v568 = vld [vmem:[#allocation8 + $0x24c] sm:$0xff]
    %v569 = vld [vmem:[#allocation8 + $0x254] sm:$0xff]
    %v570 = vld [vmem:[#allocation8 + $0x25c] sm:$0xff]
    %v571 = vld [vmem:[#allocation8 + $0x264] sm:$0xf]
    %v572 = vld [vmem:[#allocation8 + $0x268] sm:$0xff]
    %v573 = vld [vmem:[#allocation8 + $0x270] sm:$0xff]
    %v574 = vld [vmem:[#allocation8 + $0x278] sm:$0xff]
    %v575 = vld [vmem:[#allocation8 + $0x280] sm:$0xf]
    %v576 = vld [vmem:[#allocation8 + $0x284] sm:$0xff]
    %v577 = vld [vmem:[#allocation8 + $0x28c] sm:$0xff]
    %v578 = vld [vmem:[#allocation8 + $0x294] sm:$0xff]
    %v579 = vld [vmem:[#allocation8 + $0x29c] sm:$0xf]
    %v580 = vld [vmem:[#allocation8 + $0x2a0] sm:$0xff]
    %v581 = vld [vmem:[#allocation8 + $0x2a8] sm:$0xff]
    %v582 = vld [vmem:[#allocation8 + $0x2b0] sm:$0xff]
    %v583 = vld [vmem:[#allocation8 + $0x2b8] sm:$0xf]
    %v584 = vld [vmem:[#allocation8 + $0x2bc] sm:$0xff]
    %v585 = vld [vmem:[#allocation8 + $0x2c4] sm:$0xff]
    %v586 = vld [vmem:[#allocation8 + $0x2cc] sm:$0xff]
    %v587 = vld [vmem:[#allocation8 + $0x2d4] sm:$0xf]
    %v588 = vld [vmem:[#allocation8 + $0x2d8] sm:$0xff]
    %v589 = vld [vmem:[#allocation8 + $0x2e0] sm:$0xff]
    %v590 = vld [vmem:[#allocation8 + $0x2e8] sm:$0xff]
    %v591 = vld [vmem:[#allocation8 + $0x2f0] sm:$0xf]
    %v592 = vld [vmem:[#allocation8 + $0x2f4] sm:$0xff]
    %v593 = vld [vmem:[#allocation8 + $0x2fc] sm:$0xff]
    %v594 = vld [vmem:[#allocation8 + $0x304] sm:$0xff]
    %v595 = vld [vmem:[#allocation8 + $0x30c] sm:$0xf]
    %v596 = vld [vmem:[#allocation8 + $0x310] sm:$0xff]
    %v597 = vld [vmem:[#allocation8 + $0x318] sm:$0xff]
    %v598 = vld [vmem:[#allocation8 + $0x320] sm:$0xff]
    %v599 = vld [vmem:[#allocation8 + $0x328] sm:$0xf]
    %v600 = vld [vmem:[#allocation8 + $0x32c] sm:$0xff]
    %v601 = vld [vmem:[#allocation8 + $0x334] sm:$0xff]
    %v602 = vld [vmem:[#allocation8 + $0x33c] sm:$0xff]
    %v603 = vld [vmem:[#allocation8 + $0x344] sm:$0xf]
    %v604 = vld [vmem:[#allocation8 + $0x348] sm:$0xff]
    %v605 = vld [vmem:[#allocation8 + $0x350] sm:$0xff]
    %v606 = vld [vmem:[#allocation8 + $0x358] sm:$0xff]
    %v607 = vld [vmem:[#allocation8 + $0x360] sm:$0xf]
    %v608 = vld [vmem:[#allocation8 + $0x364] sm:$0xff]
    %v609 = vld [vmem:[#allocation8 + $0x36c] sm:$0xff]
    %v610 = vld [vmem:[#allocation8 + $0x374] sm:$0xff]
    %v611 = vld [vmem:[#allocation8 + $0x37c] sm:$0xf]
    %v612 = vld [vmem:[%s6] sm:$0xff]
    %v614 = vlaneseq
    %v615 = vshrl.u32 %v614, 7
    %v616 = vsub.s32 0, %v615
    %v617 = vrot.slane %v612, %v616
    %v618 = vlaneseq
    %v619 = vshrl.u32 %v618, 7
    %v620 = vsub.s32 1, %v619
    %v621 = vrot.slane %v612, %v620
    %v622 = vlaneseq
    %v623 = vshrl.u32 %v622, 7
    %v624 = vsub.s32 2, %v623
    %v625 = vrot.slane %v612, %v624
    %v626 = vlaneseq
    %v627 = vshrl.u32 %v626, 7
    %v628 = vsub.s32 3, %v627
    %v629 = vrot.slane %v612, %v628
    %v630 = vlaneseq
    %v631 = vshrl.u32 %v630, 7
    %v632 = vsub.s32 4, %v631
    %v633 = vrot.slane %v612, %v632
    %v634 = vlaneseq
    %v635 = vshrl.u32 %v634, 7
    %v636 = vsub.s32 5, %v635
    %v637 = vrot.slane %v612, %v636
    %v638 = vlaneseq
    %v639 = vshrl.u32 %v638, 7
    %v640 = vsub.s32 6, %v639
    %v641 = vrot.slane %v612, %v640
    %v777 = vunpack.c.l.b16 %v484
    %v778 = vunpack.c.h.b16 %v484
    %v779 = vunpack.c.l.b16 %v485
    %v780 = vunpack.c.h.b16 %v485
    %v781 = vunpack.c.l.b16 %v486
    %v782 = vunpack.c.h.b16 %v486
    %v783 = vunpack.c.l.b16 %v487
    %v784 = vunpack.c.l.b16 %v488
    %v785 = vunpack.c.h.b16 %v488
    %v786 = vunpack.c.l.b16 %v489
    %v787 = vunpack.c.h.b16 %v489
    %v788 = vunpack.c.l.b16 %v490
    %v789 = vunpack.c.h.b16 %v490
    %v790 = vunpack.c.l.b16 %v491
    %v791 = vunpack.c.l.b16 %v492
    %v792 = vunpack.c.h.b16 %v492
    %v793 = vunpack.c.l.b16 %v493
    %v794 = vunpack.c.h.b16 %v493
    %v795 = vunpack.c.l.b16 %v494
    %v796 = vunpack.c.h.b16 %v494
    %v797 = vunpack.c.l.b16 %v495
    %v798 = vunpack.c.l.b16 %v496
    %v799 = vunpack.c.h.b16 %v496
    %v800 = vunpack.c.l.b16 %v497
    %v801 = vunpack.c.h.b16 %v497
    %v802 = vunpack.c.l.b16 %v498
    %v803 = vunpack.c.h.b16 %v498
    %v804 = vunpack.c.l.b16 %v499
    %v805 = vunpack.c.l.b16 %v500
    %v806 = vunpack.c.h.b16 %v500
    %v807 = vunpack.c.l.b16 %v501
    %v808 = vunpack.c.h.b16 %v501
    %v809 = vunpack.c.l.b16 %v502
    %v810 = vunpack.c.h.b16 %v502
    %v811 = vunpack.c.l.b16 %v503
    %v812 = vunpack.c.l.b16 %v504
    %v813 = vunpack.c.h.b16 %v504
    %v814 = vunpack.c.l.b16 %v505
    %v815 = vunpack.c.h.b16 %v505
    %v816 = vunpack.c.l.b16 %v506
    %v817 = vunpack.c.h.b16 %v506
    %v818 = vunpack.c.l.b16 %v507
    %v819 = vunpack.c.l.b16 %v508
    %v820 = vunpack.c.h.b16 %v508
    %v821 = vunpack.c.l.b16 %v509
    %v822 = vunpack.c.h.b16 %v509
    %v823 = vunpack.c.l.b16 %v510
    %v824 = vunpack.c.h.b16 %v510
    %v825 = vunpack.c.l.b16 %v511
    %v826 = vunpack.c.l.b16 %v512
    %v827 = vunpack.c.h.b16 %v512
    %v828 = vunpack.c.l.b16 %v513
    %v829 = vunpack.c.h.b16 %v513
    %v830 = vunpack.c.l.b16 %v514
    %v831 = vunpack.c.h.b16 %v514
    %v832 = vunpack.c.l.b16 %v515
    %v833 = vunpack.c.l.b16 %v516
    %v834 = vunpack.c.h.b16 %v516
    %v835 = vunpack.c.l.b16 %v517
    %v836 = vunpack.c.h.b16 %v517
    %v837 = vunpack.c.l.b16 %v518
    %v838 = vunpack.c.h.b16 %v518
    %v839 = vunpack.c.l.b16 %v519
    %v840 = vunpack.c.l.b16 %v520
    %v841 = vunpack.c.h.b16 %v520
    %v842 = vunpack.c.l.b16 %v521
    %v843 = vunpack.c.h.b16 %v521
    %v844 = vunpack.c.l.b16 %v522
    %v845 = vunpack.c.h.b16 %v522
    %v846 = vunpack.c.l.b16 %v523
    %v847 = vunpack.c.l.b16 %v524
    %v848 = vunpack.c.h.b16 %v524
    %v849 = vunpack.c.l.b16 %v525
    %v850 = vunpack.c.h.b16 %v525
    %v851 = vunpack.c.l.b16 %v526
    %v852 = vunpack.c.h.b16 %v526
    %v853 = vunpack.c.l.b16 %v527
    %v854 = vunpack.c.l.b16 %v528
    %v855 = vunpack.c.h.b16 %v528
    %v856 = vunpack.c.l.b16 %v529
    %v857 = vunpack.c.h.b16 %v529
    %v858 = vunpack.c.l.b16 %v530
    %v859 = vunpack.c.h.b16 %v530
    %v860 = vunpack.c.l.b16 %v531
    %v861 = vunpack.c.l.b16 %v532
    %v862 = vunpack.c.h.b16 %v532
    %v863 = vunpack.c.l.b16 %v533
    %v864 = vunpack.c.h.b16 %v533
    %v865 = vunpack.c.l.b16 %v534
    %v866 = vunpack.c.h.b16 %v534
    %v867 = vunpack.c.l.b16 %v535
    %v868 = vunpack.c.l.b16 %v536
    %v869 = vunpack.c.h.b16 %v536
    %v870 = vunpack.c.l.b16 %v537
    %v871 = vunpack.c.h.b16 %v537
    %v872 = vunpack.c.l.b16 %v538
    %v873 = vunpack.c.h.b16 %v538
    %v874 = vunpack.c.l.b16 %v539
    %v875 = vunpack.c.l.b16 %v540
    %v876 = vunpack.c.h.b16 %v540
    %v877 = vunpack.c.l.b16 %v541
    %v878 = vunpack.c.h.b16 %v541
    %v879 = vunpack.c.l.b16 %v542
    %v880 = vunpack.c.h.b16 %v542
    %v881 = vunpack.c.l.b16 %v543
    %v882 = vunpack.c.l.b16 %v544
    %v883 = vunpack.c.h.b16 %v544
    %v884 = vunpack.c.l.b16 %v545
    %v885 = vunpack.c.h.b16 %v545
    %v886 = vunpack.c.l.b16 %v546
    %v887 = vunpack.c.h.b16 %v546
    %v888 = vunpack.c.l.b16 %v547
    %v889 = vunpack.c.l.b16 %v548
    %v890 = vunpack.c.h.b16 %v548
    %v891 = vunpack.c.l.b16 %v549
    %v892 = vunpack.c.h.b16 %v549
    %v893 = vunpack.c.l.b16 %v550
    %v894 = vunpack.c.h.b16 %v550
    %v895 = vunpack.c.l.b16 %v551
    %v896 = vunpack.c.l.b16 %v552
    %v897 = vunpack.c.h.b16 %v552
    %v898 = vunpack.c.l.b16 %v553
    %v899 = vunpack.c.h.b16 %v553
    %v900 = vunpack.c.l.b16 %v554
    %v901 = vunpack.c.h.b16 %v554
    %v902 = vunpack.c.l.b16 %v555
    %v903 = vunpack.c.l.b16 %v556
    %v904 = vunpack.c.h.b16 %v556
    %v905 = vunpack.c.l.b16 %v557
    %v906 = vunpack.c.h.b16 %v557
    %v907 = vunpack.c.l.b16 %v558
    %v908 = vunpack.c.h.b16 %v558
    %v909 = vunpack.c.l.b16 %v559
    %v910 = vunpack.c.l.b16 %v560
    %v911 = vunpack.c.h.b16 %v560
    %v912 = vunpack.c.l.b16 %v561
    %v913 = vunpack.c.h.b16 %v561
    %v914 = vunpack.c.l.b16 %v562
    %v915 = vunpack.c.h.b16 %v562
    %v916 = vunpack.c.l.b16 %v563
    %v917 = vunpack.c.l.b16 %v564
    %v918 = vunpack.c.h.b16 %v564
    %v919 = vunpack.c.l.b16 %v565
    %v920 = vunpack.c.h.b16 %v565
    %v921 = vunpack.c.l.b16 %v566
    %v922 = vunpack.c.h.b16 %v566
    %v923 = vunpack.c.l.b16 %v567
    %v924 = vunpack.c.l.b16 %v568
    %v925 = vunpack.c.h.b16 %v568
    %v926 = vunpack.c.l.b16 %v569
    %v927 = vunpack.c.h.b16 %v569
    %v928 = vunpack.c.l.b16 %v570
    %v929 = vunpack.c.h.b16 %v570
    %v930 = vunpack.c.l.b16 %v571
    %v931 = vunpack.c.l.b16 %v572
    %v932 = vunpack.c.h.b16 %v572
    %v933 = vunpack.c.l.b16 %v573
    %v934 = vunpack.c.h.b16 %v573
    %v935 = vunpack.c.l.b16 %v574
    %v936 = vunpack.c.h.b16 %v574
    %v937 = vunpack.c.l.b16 %v575
    %v938 = vunpack.c.l.b16 %v576
    %v939 = vunpack.c.h.b16 %v576
    %v940 = vunpack.c.l.b16 %v577
    %v941 = vunpack.c.h.b16 %v577
    %v942 = vunpack.c.l.b16 %v578
    %v943 = vunpack.c.h.b16 %v578
    %v944 = vunpack.c.l.b16 %v579
    %v945 = vunpack.c.l.b16 %v580
    %v946 = vunpack.c.h.b16 %v580
    %v947 = vunpack.c.l.b16 %v581
    %v948 = vunpack.c.h.b16 %v581
    %v949 = vunpack.c.l.b16 %v582
    %v950 = vunpack.c.h.b16 %v582
    %v951 = vunpack.c.l.b16 %v583
    %v952 = vunpack.c.l.b16 %v584
    %v953 = vunpack.c.h.b16 %v584
    %v954 = vunpack.c.l.b16 %v585
    %v955 = vunpack.c.h.b16 %v585
    %v956 = vunpack.c.l.b16 %v586
    %v957 = vunpack.c.h.b16 %v586
    %v958 = vunpack.c.l.b16 %v587
    %v959 = vunpack.c.l.b16 %v588
    %v960 = vunpack.c.h.b16 %v588
    %v961 = vunpack.c.l.b16 %v589
    %v962 = vunpack.c.h.b16 %v589
    %v963 = vunpack.c.l.b16 %v590
    %v964 = vunpack.c.h.b16 %v590
    %v965 = vunpack.c.l.b16 %v591
    %v966 = vunpack.c.l.b16 %v592
    %v967 = vunpack.c.h.b16 %v592
    %v968 = vunpack.c.l.b16 %v593
    %v969 = vunpack.c.h.b16 %v593
    %v970 = vunpack.c.l.b16 %v594
    %v971 = vunpack.c.h.b16 %v594
    %v972 = vunpack.c.l.b16 %v595
    %v973 = vunpack.c.l.b16 %v596
    %v974 = vunpack.c.h.b16 %v596
    %v975 = vunpack.c.l.b16 %v597
    %v976 = vunpack.c.h.b16 %v597
    %v977 = vunpack.c.l.b16 %v598
    %v978 = vunpack.c.h.b16 %v598
    %v979 = vunpack.c.l.b16 %v599
    %v980 = vunpack.c.l.b16 %v600
    %v981 = vunpack.c.h.b16 %v600
    %v982 = vunpack.c.l.b16 %v601
    %v983 = vunpack.c.h.b16 %v601
    %v984 = vunpack.c.l.b16 %v602
    %v985 = vunpack.c.h.b16 %v602
    %v986 = vunpack.c.l.b16 %v603
    %v987 = vunpack.c.l.b16 %v604
    %v988 = vunpack.c.h.b16 %v604
    %v989 = vunpack.c.l.b16 %v605
    %v990 = vunpack.c.h.b16 %v605
    %v991 = vunpack.c.l.b16 %v606
    %v992 = vunpack.c.h.b16 %v606
    %v993 = vunpack.c.l.b16 %v607
    %v994 = vunpack.c.l.b16 %v608
    %v995 = vunpack.c.h.b16 %v608
    %v996 = vunpack.c.l.b16 %v609
    %v997 = vunpack.c.h.b16 %v609
    %v998 = vunpack.c.l.b16 %v610
    %v999 = vunpack.c.h.b16 %v610
    %v1000 = vunpack.c.l.b16 %v611
    %v1001 = vpack.c.b16 %v784, %v777
    %v1002 = vpack.c.b16 %v785, %v778
    %v1003 = vpack.c.b16 %v786, %v779
    %v1004 = vpack.c.b16 %v787, %v780
    %v1005 = vpack.c.b16 %v788, %v781
    %v1006 = vpack.c.b16 %v789, %v782
    %v1007 = vpack.c.b16 %v790, %v783
    %v1008 = vpack.c.b16 %v798, %v791
    %v1009 = vpack.c.b16 %v799, %v792
    %v1010 = vpack.c.b16 %v800, %v793
    %v1011 = vpack.c.b16 %v801, %v794
    %v1012 = vpack.c.b16 %v802, %v795
    %v1013 = vpack.c.b16 %v803, %v796
    %v1014 = vpack.c.b16 %v804, %v797
    %v1015 = vpack.c.b16 %v812, %v805
    %v1016 = vpack.c.b16 %v813, %v806
    %v1017 = vpack.c.b16 %v814, %v807
    %v1018 = vpack.c.b16 %v815, %v808
    %v1019 = vpack.c.b16 %v816, %v809
    %v1020 = vpack.c.b16 %v817, %v810
    %v1021 = vpack.c.b16 %v818, %v811
    %v1022 = vpack.c.b16 %v826, %v819
    %v1023 = vpack.c.b16 %v827, %v820
    %v1024 = vpack.c.b16 %v828, %v821
    %v1025 = vpack.c.b16 %v829, %v822
    %v1026 = vpack.c.b16 %v830, %v823
    %v1027 = vpack.c.b16 %v831, %v824
    %v1028 = vpack.c.b16 %v832, %v825
    %v1029 = vpack.c.b16 %v840, %v833
    %v1030 = vpack.c.b16 %v841, %v834
    %v1031 = vpack.c.b16 %v842, %v835
    %v1032 = vpack.c.b16 %v843, %v836
    %v1033 = vpack.c.b16 %v844, %v837
    %v1034 = vpack.c.b16 %v845, %v838
    %v1035 = vpack.c.b16 %v846, %v839
    %v1036 = vpack.c.b16 %v854, %v847
    %v1037 = vpack.c.b16 %v855, %v848
    %v1038 = vpack.c.b16 %v856, %v849
    %v1039 = vpack.c.b16 %v857, %v850
    %v1040 = vpack.c.b16 %v858, %v851
    %v1041 = vpack.c.b16 %v859, %v852
    %v1042 = vpack.c.b16 %v860, %v853
    %v1043 = vpack.c.b16 %v868, %v861
    %v1044 = vpack.c.b16 %v869, %v862
    %v1045 = vpack.c.b16 %v870, %v863
    %v1046 = vpack.c.b16 %v871, %v864
    %v1047 = vpack.c.b16 %v872, %v865
    %v1048 = vpack.c.b16 %v873, %v866
    %v1049 = vpack.c.b16 %v874, %v867
    %v1050 = vpack.c.b16 %v882, %v875
    %v1051 = vpack.c.b16 %v883, %v876
    %v1052 = vpack.c.b16 %v884, %v877
    %v1053 = vpack.c.b16 %v885, %v878
    %v1054 = vpack.c.b16 %v886, %v879
    %v1055 = vpack.c.b16 %v887, %v880
    %v1056 = vpack.c.b16 %v888, %v881
    %v1057 = vpack.c.b16 %v896, %v889
    %v1058 = vpack.c.b16 %v897, %v890
    %v1059 = vpack.c.b16 %v898, %v891
    %v1060 = vpack.c.b16 %v899, %v892
    %v1061 = vpack.c.b16 %v900, %v893
    %v1062 = vpack.c.b16 %v901, %v894
    %v1063 = vpack.c.b16 %v902, %v895
    %v1064 = vpack.c.b16 %v910, %v903
    %v1065 = vpack.c.b16 %v911, %v904
    %v1066 = vpack.c.b16 %v912, %v905
    %v1067 = vpack.c.b16 %v913, %v906
    %v1068 = vpack.c.b16 %v914, %v907
    %v1069 = vpack.c.b16 %v915, %v908
    %v1070 = vpack.c.b16 %v916, %v909
    %v1071 = vpack.c.b16 %v924, %v917
    %v1072 = vpack.c.b16 %v925, %v918
    %v1073 = vpack.c.b16 %v926, %v919
    %v1074 = vpack.c.b16 %v927, %v920
    %v1075 = vpack.c.b16 %v928, %v921
    %v1076 = vpack.c.b16 %v929, %v922
    %v1077 = vpack.c.b16 %v930, %v923
    %v1078 = vpack.c.b16 %v938, %v931
    %v1079 = vpack.c.b16 %v939, %v932
    %v1080 = vpack.c.b16 %v940, %v933
    %v1081 = vpack.c.b16 %v941, %v934
    %v1082 = vpack.c.b16 %v942, %v935
    %v1083 = vpack.c.b16 %v943, %v936
    %v1084 = vpack.c.b16 %v944, %v937
    %v1085 = vpack.c.b16 %v952, %v945
    %v1086 = vpack.c.b16 %v953, %v946
    %v1087 = vpack.c.b16 %v954, %v947
    %v1088 = vpack.c.b16 %v955, %v948
    %v1089 = vpack.c.b16 %v956, %v949
    %v1090 = vpack.c.b16 %v957, %v950
    %v1091 = vpack.c.b16 %v958, %v951
    %v1092 = vpack.c.b16 %v966, %v959
    %v1093 = vpack.c.b16 %v967, %v960
    %v1094 = vpack.c.b16 %v968, %v961
    %v1095 = vpack.c.b16 %v969, %v962
    %v1096 = vpack.c.b16 %v970, %v963
    %v1097 = vpack.c.b16 %v971, %v964
    %v1098 = vpack.c.b16 %v972, %v965
    %v1099 = vpack.c.b16 %v980, %v973
    %v1100 = vpack.c.b16 %v981, %v974
    %v1101 = vpack.c.b16 %v982, %v975
    %v1102 = vpack.c.b16 %v983, %v976
    %v1103 = vpack.c.b16 %v984, %v977
    %v1104 = vpack.c.b16 %v985, %v978
    %v1105 = vpack.c.b16 %v986, %v979
    %v1106 = vpack.c.b16 %v994, %v987
    %v1107 = vpack.c.b16 %v995, %v988
    %v1108 = vpack.c.b16 %v996, %v989
    %v1109 = vpack.c.b16 %v997, %v990
    %v1110 = vpack.c.b16 %v998, %v991
    %v1111 = vpack.c.b16 %v999, %v992
    %v1112 = vpack.c.b16 %v1000, %v993
    %1225 = vmatprep.subr.bf16.mxu0 %v1002
    %1226 = vmatpush1.bf16.msra.mxu0 %v1001
    %1227 = vmatprep.subr.bf16.mxu0 %v1009
    %1228 = vmatpush1.bf16.msra.mxu0 %v1008
    %1229 = vmatprep.subr.bf16.mxu0 %v1016
    %1230 = vmatpush1.bf16.msra.mxu0 %v1015
    %1231 = vmatprep.subr.bf16.mxu0 %v1023
    %1232 = vmatpush1.bf16.msra.mxu0 %v1022
    %1233 = vmatprep.subr.bf16.mxu0 %v1030
    %1234 = vmatpush1.bf16.msra.mxu0 %v1029
    %1235 = vmatprep.subr.bf16.mxu0 %v1037
    %1236 = vmatpush1.bf16.msra.mxu0 %v1036
    %1237 = vmatprep.subr.bf16.mxu0 %v1044
    %1238 = vmatpush1.bf16.msra.mxu0 %v1043
    %1239 = vmatprep.subr.bf16.mxu0 %v1051
    %1240 = vmatpush1.bf16.msra.mxu0 %v1050
    %1241 = vmatprep.subr.bf16.mxu0 %v1058
    %1242 = vmatpush1.bf16.msra.mxu0 %v1057
    %1243 = vmatprep.subr.bf16.mxu0 %v1065
    %1244 = vmatpush1.bf16.msra.mxu0 %v1064
    %1245 = vmatprep.subr.bf16.mxu0 %v1072
    %1246 = vmatpush1.bf16.msra.mxu0 %v1071
    %1247 = vmatprep.subr.bf16.mxu0 %v1079
    %1248 = vmatpush1.bf16.msra.mxu0 %v1078
    %1249 = vmatprep.subr.bf16.mxu0 %v1086
    %1250 = vmatpush1.bf16.msra.mxu0 %v1085
    %1251 = vmatprep.subr.bf16.mxu0 %v1093
    %1252 = vmatpush1.bf16.msra.mxu0 %v1092
    %1253 = vmatprep.subr.bf16.mxu0 %v1100
    %1254 = vmatpush1.bf16.msra.mxu0 %v1099
    %1255 = vmatprep.subr.bf16.mxu0 %v1107
    %1256 = vmatpush1.bf16.msra.mxu0 %v1106
    %1257 = vmatprep.mubr.bf16.mxu0 %v483
    %1258 = vmatmul.mubr.bf16.gmra.mrb[0].mxu0 %v482
    %v1259 = vpop.f32.mrb[0].mxu0
    %v1260 = vadd.f32 %v617, %v1259
    %v1261 = vpop.f32.mrb[0].mxu0
    %v1262 = vadd.f32 %v621, %v1261
    %v1263 = vpop.f32.mrb[0].mxu0
    %v1264 = vpop.f32.mrb[0].mxu0
    %1265 = vdwg.mxu0
    %1266 = vmatprep.subr.bf16.mxu0 %v1004
    %1267 = vmatpush1.bf16.msra.mxu0 %v1003
    %1268 = vmatprep.subr.bf16.mxu0 %v1011
    %1269 = vmatpush1.bf16.msra.mxu0 %v1010
    %1270 = vmatprep.subr.bf16.mxu0 %v1018
    %1271 = vmatpush1.bf16.msra.mxu0 %v1017
    %1272 = vmatprep.subr.bf16.mxu0 %v1025
    %1273 = vmatpush1.bf16.msra.mxu0 %v1024
    %1274 = vmatprep.subr.bf16.mxu0 %v1032
    %1275 = vmatpush1.bf16.msra.mxu0 %v1031
    %1276 = vmatprep.subr.bf16.mxu0 %v1039
    %1277 = vmatpush1.bf16.msra.mxu0 %v1038
    %1278 = vmatprep.subr.bf16.mxu0 %v1046
    %1279 = vmatpush1.bf16.msra.mxu0 %v1045
    %1280 = vmatprep.subr.bf16.mxu0 %v1053
    %1281 = vmatpush1.bf16.msra.mxu0 %v1052
    %1282 = vmatprep.subr.bf16.mxu0 %v1060
    %1283 = vmatpush1.bf16.msra.mxu0 %v1059
    %1284 = vmatprep.subr.bf16.mxu0 %v1067
    %1285 = vmatpush1.bf16.msra.mxu0 %v1066
    %1286 = vmatprep.subr.bf16.mxu0 %v1074
    %1287 = vmatpush1.bf16.msra.mxu0 %v1073
    %1288 = vmatprep.subr.bf16.mxu0 %v1081
    %1289 = vmatpush1.bf16.msra.mxu0 %v1080
    %1290 = vmatprep.subr.bf16.mxu0 %v1088
    %1291 = vmatpush1.bf16.msra.mxu0 %v1087
    %1292 = vmatprep.subr.bf16.mxu0 %v1095
    %1293 = vmatpush1.bf16.msra.mxu0 %v1094
    %1294 = vmatprep.subr.bf16.mxu0 %v1102
    %1295 = vmatpush1.bf16.msra.mxu0 %v1101
    %1296 = vmatprep.subr.bf16.mxu0 %v1109
    %1297 = vmatpush1.bf16.msra.mxu0 %v1108
    %1298 = vmatprep.mubr.bf16.mxu0 %v483
    %1299 = vmatmul.mubr.bf16.gmra.mrb[0].mxu0 %v482
    %v1300 = vpop.f32.mrb[0].mxu0
    %v1301 = vadd.f32 %v625, %v1300
    %v1302 = vpop.f32.mrb[0].mxu0
    %v1303 = vadd.f32 %v629, %v1302
    %v1304 = vpop.f32.mrb[0].mxu0
    %v1305 = vpop.f32.mrb[0].mxu0
    %1306 = vdwg.mxu0
    %1307 = vmatprep.subr.bf16.mxu0 %v1006
    %1308 = vmatpush1.bf16.msra.mxu0 %v1005
    %1309 = vmatprep.subr.bf16.mxu0 %v1013
    %1310 = vmatpush1.bf16.msra.mxu0 %v1012
    %1311 = vmatprep.subr.bf16.mxu0 %v1020
    %1312 = vmatpush1.bf16.msra.mxu0 %v1019
    %1313 = vmatprep.subr.bf16.mxu0 %v1027
    %1314 = vmatpush1.bf16.msra.mxu0 %v1026
    %1315 = vmatprep.subr.bf16.mxu0 %v1034
    %1316 = vmatpush1.bf16.msra.mxu0 %v1033
    %1317 = vmatprep.subr.bf16.mxu0 %v1041
    %1318 = vmatpush1.bf16.msra.mxu0 %v1040
    %1319 = vmatprep.subr.bf16.mxu0 %v1048
    %1320 = vmatpush1.bf16.msra.mxu0 %v1047
    %1321 = vmatprep.subr.bf16.mxu0 %v1055
    %1322 = vmatpush1.bf16.msra.mxu0 %v1054
    %1323 = vmatprep.subr.bf16.mxu0 %v1062
    %1324 = vmatpush1.bf16.msra.mxu0 %v1061
    %1325 = vmatprep.subr.bf16.mxu0 %v1069
    %1326 = vmatpush1.bf16.msra.mxu0 %v1068
    %1327 = vmatprep.subr.bf16.mxu0 %v1076
    %1328 = vmatpush1.bf16.msra.mxu0 %v1075
    %1329 = vmatprep.subr.bf16.mxu0 %v1083
    %1330 = vmatpush1.bf16.msra.mxu0 %v1082
    %1331 = vmatprep.subr.bf16.mxu0 %v1090
    %1332 = vmatpush1.bf16.msra.mxu0 %v1089
    %1333 = vmatprep.subr.bf16.mxu0 %v1097
    %1334 = vmatpush1.bf16.msra.mxu0 %v1096
    %1335 = vmatprep.subr.bf16.mxu0 %v1104
    %1336 = vmatpush1.bf16.msra.mxu0 %v1103
    %1337 = vmatprep.subr.bf16.mxu0 %v1111
    %1338 = vmatpush1.bf16.msra.mxu0 %v1110
    %1339 = vmatprep.mubr.bf16.mxu0 %v483
    %1340 = vmatmul.mubr.bf16.gmra.mrb[0].mxu0 %v482
    %v1341 = vpop.f32.mrb[0].mxu0
    %v1342 = vadd.f32 %v633, %v1341
    %v1343 = vpop.f32.mrb[0].mxu0
    %v1344 = vadd.f32 %v637, %v1343
    %v1345 = vpop.f32.mrb[0].mxu0
    %v1346 = vpop.f32.mrb[0].mxu0
    %1347 = vdwg.mxu0
    %1348 = vmatprep.subr.bf16.mxu0 0
    %1349 = vmatpush1.bf16.msra.mxu0 %v1007
    %1350 = vmatprep.subr.bf16.mxu0 0
    %1351 = vmatpush1.bf16.msra.mxu0 %v1014
    %1352 = vmatprep.subr.bf16.mxu0 0
    %1353 = vmatpush1.bf16.msra.mxu0 %v1021
    %1354 = vmatprep.subr.bf16.mxu0 0
    %1355 = vmatpush1.bf16.msra.mxu0 %v1028
    %1356 = vmatprep.subr.bf16.mxu0 0
    %1357 = vmatpush1.bf16.msra.mxu0 %v1035
    %1358 = vmatprep.subr.bf16.mxu0 0
    %1359 = vmatpush1.bf16.msra.mxu0 %v1042
    %1360 = vmatprep.subr.bf16.mxu0 0
    %1361 = vmatpush1.bf16.msra.mxu0 %v1049
    %1362 = vmatprep.subr.bf16.mxu0 0
    %1363 = vmatpush1.bf16.msra.mxu0 %v1056
    %1364 = vmatprep.subr.bf16.mxu0 0
    %1365 = vmatpush1.bf16.msra.mxu0 %v1063
    %1366 = vmatprep.subr.bf16.mxu0 0
    %1367 = vmatpush1.bf16.msra.mxu0 %v1070
    %1368 = vmatprep.subr.bf16.mxu0 0
    %1369 = vmatpush1.bf16.msra.mxu0 %v1077
    %1370 = vmatprep.subr.bf16.mxu0 0
    %1371 = vmatpush1.bf16.msra.mxu0 %v1084
    %1372 = vmatprep.subr.bf16.mxu0 0
    %1373 = vmatpush1.bf16.msra.mxu0 %v1091
    %1374 = vmatprep.subr.bf16.mxu0 0
    %1375 = vmatpush1.bf16.msra.mxu0 %v1098
    %1376 = vmatprep.subr.bf16.mxu0 0
    %1377 = vmatpush1.bf16.msra.mxu0 %v1105
    %1378 = vmatprep.subr.bf16.mxu0 0
    %1379 = vmatpush1.bf16.msra.mxu0 %v1112
    %1380 = vmatprep.mubr.bf16.mxu0 %v483
    %1381 = vmatmul.mubr.bf16.gmra.mrb[0].mxu0 %v482
    %v1382 = vpop.f32.mrb[0].mxu0
    %v1383 = vadd.f32 %v641, %v1382
    %v1384 = vpop.f32.mrb[0].mxu0
    %v1385 = vpop.f32.mrb[0].mxu0
    %v1386 = vpop.f32.mrb[0].mxu0
    %1387 = vdwg.mxu0
    %v1388 = vtanh.pop %v1260
    %v1389 = vtanh.pop %v1262
    %v1390 = vtanh.pop %v1301
    %v1391 = vtanh.pop %v1303
    %v1392 = vtanh.pop %v1342
    %v1393 = vtanh.pop %v1344
    %v1394 = vtanh.pop %v1383
    %1395 = vst [vmem:[#allocation10] sm:$0xff] %v1388
    %1396 = vst [vmem:[#allocation10 + $0x8] sm:$0xff] %v1389
    %1397 = vst [vmem:[#allocation10 + $0x10] sm:$0xff] %v1390
    %1398 = vst [vmem:[#allocation10 + $0x18] sm:$0xff] %v1391
    %1399 = vst [vmem:[#allocation10 + $0x20] sm:$0xff] %v1392
    %1400 = vst [vmem:[#allocation10 + $0x28] sm:$0xff] %v1393
    %1401 = vst [vmem:[#allocation10 + $0x30] sm:$0xff] %v1394
    // Predicated region
    $region46: #{tpu_custom_call.1} parent=1 // pred_check
      _
    $region47: #{tpu_custom_call.1} parent=1 // pred_check_branch
      %1403 = sbr.rel (0) target = $region49
    $region48: #{tpu_custom_call.1} parent=1 // pred_region
      %s1405 = ssub.s32 896, 896
      %1406 = vsyncadd [#allocation4], %s1405
      %s1408 = sshll.u32 [#allocation10], 4
      %s1409 = int_to_ptr.vmem [resolvable:$true] %s1408
      %1411 = dma.vmem_to_hbm [thread:$0]  %s1409, 896, %s7, [#allocation4]
    $region49: #{tpu_custom_call.1} parent=1 // pred_fallthru
      _
    // Predicated region
    $region50: #{tpu_custom_call.1} parent=1 // pred_check
      _
    $region51: #{tpu_custom_call.1} parent=1 // pred_check_branch
      %1413 = sbr.rel (0) target = $region53
    $region52: #{tpu_custom_call.1} parent=1 // pred_region
      %1414 = dma.done [#allocation4], 896
    $region53: #{tpu_custom_call.1} parent=1 // pred_fallthru
      _
    %1415 = vsyncpa [#allocation3], 1
    %1416 = vsyncpa [#allocation6], 1
    %1417 = vsyncpa [#allocation9], 1
    %1418 = vsyncpa [#allocation4], 1

</llo_original>
